<compile_context>
chip_gen: v6e
topology: v6e:2x2x1
jax: 0.10.0
libtpu: 0.0.40
codegen_flags: <defaults>
</compile_context>

<pallas_src>
import functools

import jax
import jax.numpy as jnp
from jax.experimental import pallas as pl
from jax.experimental.pallas import tpu as pltpu

_SUBLANE = 8
_LANE = 128


def _round_up(a, b):
    return (a + b - 1) // b * b


def _sublane_multiple(dtype):
    # Native sublane tile: 8 (f32), 16 (bf16), 32 (int8/fp8).
    return max(_SUBLANE, 32 // jnp.dtype(dtype).itemsize)


def _vmem_budget_bytes():
    cap = None
    try:
        info = pltpu.get_tpu_info()
        cap = getattr(info, "vmem_capacity_bytes", None)
    except Exception:
        cap = None
    if not cap:
        cap = 64 << 20  # conservative fallback sized for v7x
    # Leave headroom for Mosaic-internal scratch / semaphores.
    return max(int(cap) - (20 << 20), 16 << 20)


def _tile_options(total, unit, cap=None, min_blocks=1):
    """128-multiple divisors of `total` (descending), optionally capped."""
    lim = total if cap is None else min(cap, total)
    opts = [d for d in range(unit, lim + 1, unit)
            if total % d == 0 and total // d >= min_blocks]
    if not opts:
        opts = [unit if total % unit == 0 else total]
    return sorted(opts, reverse=True)


def _pick_tiles(M, Np, Kp, x_item, w_item, out_item, sub, budget, scratch_if_split):
    tm = _round_up(min(M, 1024), sub)
    tm_floor = _round_up(min(M, 256), sub)
    tn_opts = _tile_options(Np, _LANE, cap=1024,
                            min_blocks=2 if Np >= 2 * _LANE else 1)
    tk_opts = _tile_options(Kp, _LANE)
    tn = tn_opts[0]
    tk = tk_opts[0]  # == Kp: prefer a single pass over K

    def need(tm_, tn_, tk_):
        v = 2 * (tm_ * tk_ * x_item + tk_ * tn_ * w_item)   # double-buffered inputs
        v += 2 * tm_ * tn_ * out_item                       # double-buffered output
        if tk_ != Kp and scratch_if_split:
            v += tm_ * tn_ * 4                              # f32 accumulator scratch
        return v

    if need(tm, tn, tk) <= budget:
        return tm, tn, tk
    # 1) split K (adds no HBM traffic, only per-step overhead), keep tk >= 1024
    for cand in tk_opts:
        if cand < min(1024, Kp):
            break
        tk = cand
        if need(tm, tn, tk) <= budget:
            return tm, tn, tk
    # 2) shrink tm towards 256 (costs weight re-reads for prefill-sized M)
    while tm > tm_floor and need(tm, tn, tk) > budget:
        tm = max(tm_floor, _round_up(tm // 2, sub))
    if need(tm, tn, tk) <= budget:
        return tm, tn, tk
    # 3) shrink tn (costs activation re-reads), floor 128
    for cand in tn_opts:
        tn = cand
        if need(tm, tn, tk) <= budget:
            return tm, tn, tk
    # 4) split K all the way down to 128
    for cand in tk_opts:
        tk = cand
        if need(tm, tn, tk) <= budget:
            return tm, tn, tk
    # 5) last resort: shrink tm to the native sublane tile
    while tm > sub and need(tm, tn, tk) > budget:
        tm = max(sub, _round_up(tm // 2, sub))
    return tm, tn, tk


def _linear_kernel(x_ref, w_ref, o_ref):
    # Single pass over K: no accumulator, no predicated epilogue.
    o_ref[...] = jnp.dot(
        x_ref[...], w_ref[...], preferred_element_type=jnp.float32
    ).astype(o_ref.dtype)


def _linear_acc_out_kernel(x_ref, w_ref, o_ref):
    # K split across the last ("arbitrary") grid axis, f32 output:
    # accumulate directly into the resident output block (no scratch).
    @pl.when(pl.program_id(2) == 0)
    def _():
        o_ref[...] = jnp.zeros_like(o_ref)

    o_ref[...] += jnp.dot(x_ref[...], w_ref[...],
                          preferred_element_type=jnp.float32)


def _linear_acc_scratch_kernel(x_ref, w_ref, o_ref, acc_ref):
    # K split, low-precision output: accumulate in an f32 scratch.
    @pl.when(pl.program_id(2) == 0)
    def _():
        acc_ref[...] = jnp.zeros_like(acc_ref)

    acc_ref[...] += jnp.dot(x_ref[...], w_ref[...],
                            preferred_element_type=jnp.float32)

    @pl.when(pl.program_id(2) == pl.num_programs(2) - 1)
    def _():
        o_ref[...] = acc_ref[...].astype(o_ref.dtype)


@functools.partial(jax.jit, static_argnames=("n_out", "vmem_budget"))
def _vhead_forward(x, weight_t, *, n_out, vmem_budget):
    """y = x @ W.T with W pre-transposed/padded/cast to weight_t of shape (Kp, Np)."""
    *lead, K = x.shape
    Kp, Np = weight_t.shape
    compute_dtype = weight_t.dtype
    out_dtype = x.dtype

    x2d = x.reshape(-1, K).astype(compute_dtype)
    M = x2d.shape[0]
    if Kp != K:
        # Zero K-padding contributes nothing to the contraction.
        x2d = jnp.pad(x2d, ((0, 0), (0, Kp - K)))

    x_item = jnp.dtype(compute_dtype).itemsize
    w_item = x_item
    out_item = jnp.dtype(out_dtype).itemsize
    sub = _sublane_multiple(compute_dtype)
    scratch_if_split = out_dtype != jnp.float32

    tm, tn, tk = _pick_tiles(M, Np, Kp, x_item, w_item, out_item, sub,
                             vmem_budget, scratch_if_split)

    Mp = _round_up(M, tm)
    if Mp != M:
        x2d = jnp.pad(x2d, ((0, Mp - M), (0, 0)))

    gm, gn, gk = Mp // tm, Np // tn, Kp // tk

    # Bytes reflect the actual re-read multipliers of this tiling.
    cost = pl.CostEstimate(
        flops=2 * Mp * Np * Kp,
        transcendentals=0,
        bytes_accessed=(gn * Mp * Kp * x_item
                        + gm * Np * Kp * w_item
                        + Mp * Np * out_item),
    )
    vmem_needed = (2 * (tm * tk * x_item + tk * tn * w_item)
                   + 2 * tm * tn * out_item
                   + (tm * tn * 4 if (gk > 1 and scratch_if_split) else 0))
    vmem_limit = int(max(32 << 20,
                         min(vmem_needed + (8 << 20), vmem_budget + (16 << 20))))

    if gk == 1:
        out = pl.pallas_call(
            _linear_kernel,
            out_shape=jax.ShapeDtypeStruct((Mp, Np), out_dtype),
            grid_spec=pltpu.PrefetchScalarGridSpec(
                num_scalar_prefetch=0,
                grid=(gn, gm),  # N leading: independent columns across v7x TCs
                in_specs=[
                    pl.BlockSpec((tm, tk), lambda j, i: (i, 0)),
                    pl.BlockSpec((tk, tn), lambda j, i: (0, j)),
                ],
                out_specs=pl.BlockSpec((tm, tn), lambda j, i: (i, j)),
            ),
            compiler_params=pltpu.CompilerParams(
                dimension_semantics=("parallel", "parallel"),
                vmem_limit_bytes=vmem_limit,
            ),
            cost_estimate=cost,
        )(x2d, weight_t)
    else:
        if scratch_if_split:
            kernel = _linear_acc_scratch_kernel
            scratch = [pltpu.VMEM((tm, tn), jnp.float32)]
        else:
            kernel = _linear_acc_out_kernel
            scratch = []
        out = pl.pallas_call(
            kernel,
            out_shape=jax.ShapeDtypeStruct((Mp, Np), out_dtype),
            grid_spec=pltpu.PrefetchScalarGridSpec(
                num_scalar_prefetch=0,
                grid=(gn, gm, gk),  # reduction axis last
                in_specs=[
                    pl.BlockSpec((tm, tk), lambda j, i, k: (i, k)),
                    pl.BlockSpec((tk, tn), lambda j, i, k: (k, j)),
                ],
                out_specs=pl.BlockSpec((tm, tn), lambda j, i, k: (i, j)),
                scratch_shapes=scratch,
            ),
            compiler_params=pltpu.CompilerParams(
                dimension_semantics=("parallel", "parallel", "arbitrary"),
                vmem_limit_bytes=vmem_limit,
            ),
            cost_estimate=cost,
        )(x2d, weight_t)

    out = out[:M, :n_out]
    return out.reshape(*lead, n_out)


class VheadPallas:
    """Pallas TPU port of eagle Vhead (nn.Linear(ins, outs, bias=False))."""

    def __init__(self, weight, compute_dtype=jnp.bfloat16, vmem_budget_bytes=None):
        weight = jnp.asarray(weight)          # (outs, ins), PyTorch layout
        n, k = weight.shape
        self.out_features = int(n)
        self.in_features = int(k)
        kp = _round_up(k, _LANE)
        np_ = _round_up(n, _LANE)
        # One-time weight prep: transpose to (K, N), cast to the streaming dtype,
        # pad K/N up to 128 multiples.  Done once at init, never per call.
        w = weight.T.astype(compute_dtype)
        if kp != k or np_ != n:
            w = jnp.pad(w, ((0, kp - k), (0, np_ - n)))
        self.weight_t = w                     # (Kp, Np)
        self.vmem_budget = (int(vmem_budget_bytes) if vmem_budget_bytes
                            else _vmem_budget_bytes())
        # TODO(synk): add an fp8-weight path (per-output-channel scales) for v7x
        # to halve weight HBM traffic again on decode-sized, mem-bound calls.

    def __call__(self, x):
        assert x.shape[-1] == self.in_features
        return _vhead_forward(x, self.weight_t,
                              n_out=self.out_features,
                              vmem_budget=self.vmem_budget)


if __name__ == "__main__":
    key = jax.random.PRNGKey(0)
    k1, k2, k3, k4, k5 = jax.random.split(key, 5)

    def ref_linear(x, w):
        # Reference with the same bf16-quantized operands the kernel streams.
        xq = x.astype(jnp.bfloat16).astype(jnp.float32)
        wq = w.astype(jnp.bfloat16).astype(jnp.float32)
        return jnp.einsum("...k,nk->...n", xq, wq,
                          precision=jax.lax.Precision.HIGHEST)

    # --- 1) small decode-like shape: single pass over K ----------------------
    batch, seq, ins, outs = 2, 8, 256, 512
    x = jax.random.normal(k1, (batch, seq, ins), dtype=jnp.float32)
    bound = 1.0 / (ins ** 0.5)
    w = jax.random.uniform(k2, (outs, ins), jnp.float32, minval=-bound, maxval=bound)
    head = VheadPallas(w)
    y = jax.block_until_ready(head(x))
    assert y.shape == (batch, seq, outs) and y.dtype == x.dtype
    err = jnp.max(jnp.abs(y - ref_linear(x, w)))
    assert err < 5e-3, float(err)

    # --- 2) larger K + tiny VMEM budget: split-K, accumulate into o_ref ------
    ins2, outs2 = 4096, 512
    x2 = jax.random.normal(k3, (batch, seq, ins2), dtype=jnp.float32)
    bound2 = 1.0 / (ins2 ** 0.5)
    w2 = jax.random.uniform(k4, (outs2, ins2), jnp.float32,
                            minval=-bound2, maxval=bound2)
    head2 = VheadPallas(w2, vmem_budget_bytes=4 << 20)
    y2 = jax.block_until_ready(head2(x2))
    assert y2.shape == (batch, seq, outs2)
    err2 = jnp.max(jnp.abs(y2 - ref_linear(x2, w2)))
    assert err2 < 5e-3, float(err2)

    # --- 3) bf16 activations + split K: f32 scratch-accumulator path ---------
    x3 = jax.random.normal(k5, (batch, seq, ins2), dtype=jnp.bfloat16)
    y3 = jax.block_until_ready(head2(x3))
    assert y3.dtype == jnp.bfloat16
    err3 = jnp.max(jnp.abs(y3.astype(jnp.float32) - ref_linear(x3, w2)))
    assert err3 < 3e-2, float(err3)

    print("KERNEL_OK")
</pallas_src>

<mosaic_0001>
module attributes {stable_mosaic.version = 11 : i64} {
  func.func @_linear_kernel(%arg0: i32, %arg1: i32, %arg2: memref<16x256xbf16, #tpu.memory_space<vmem>>, %arg3: memref<256x256xbf16, #tpu.memory_space<vmem>>, %arg4: memref<16x256xf32, #tpu.memory_space<vmem>>) attributes {dimension_semantics = [#tpu.dimension_semantics<parallel>, #tpu.dimension_semantics<parallel>], iteration_bounds = array<i64: 2, 1>, scalar_prefetch = 0 : i64, scratch_operands = 0 : i64, tpu.core_type = #tpu.core_type<tc>, window_params = [{transform_indices = @transform_0, window_bounds = array<i64: 16, 256>}, {transform_indices = @transform_1, window_bounds = array<i64: 256, 256>}, {transform_indices = @transform_2, window_bounds = array<i64: 16, 256>}]} {
    %c0 = arith.constant 0 : index
    %c0_0 = arith.constant 0 : index
    %0 = vector.load %arg2[%c0, %c0_0] : memref<16x256xbf16, #tpu.memory_space<vmem>>, vector<16x256xbf16>
    %c0_1 = arith.constant 0 : index
    %c0_2 = arith.constant 0 : index
    %1 = vector.load %arg3[%c0_1, %c0_2] : memref<256x256xbf16, #tpu.memory_space<vmem>>, vector<256x256xbf16>
    %cst = arith.constant dense<0.000000e+00> : vector<16x256xf32>
    %2 = tpu.matmul %0, %1, %cst {dimension_numbers = #tpu.dot_dimension_numbers<[1], [0], [0], [1], [0, 0, 1, 1], [], []>} : vector<16x256xbf16>, vector<256x256xbf16>, vector<16x256xf32> -> vector<16x256xf32>
    %c0_3 = arith.constant 0 : index
    %c0_4 = arith.constant 0 : index
    %3 = vector.load %arg4[%c0_3, %c0_4] : memref<16x256xf32, #tpu.memory_space<vmem>>, vector<16x256xf32>
    tpu.vector_store %arg4[%c0_3, %c0_4], %2 {strides = array<i32>} : memref<16x256xf32, #tpu.memory_space<vmem>>, vector<16x256xf32>,
    return
  }
  func.func @transform_0(%arg0: i32, %arg1: i32) -> (i32, i32) {
    %c0_i32 = arith.constant 0 : i32
    %c0_i32_0 = arith.constant 0 : i32
    return %arg1, %c0_i32 : i32, i32
  }
  func.func @transform_1(%arg0: i32, %arg1: i32) -> (i32, i32) {
    %c0_i32 = arith.constant 0 : i32
    %c0_i32_0 = arith.constant 0 : i32
    return %c0_i32, %arg0 : i32, i32
  }
  func.func @transform_2(%arg0: i32, %arg1: i32) -> (i32, i32) {
    %c0_i32 = arith.constant 0 : i32
    return %arg1, %arg0 : i32, i32
  }
}

</mosaic_0001>

<llo_original>
// kernel: _vhead_forward.1
$region0: #{_vhead_forward.1}
  #allocation0 [shape = 'u32[]', space=smem, size = 0x4, offset = 0x4, fixed_abs, tag = 'smem constant byte address 0x4 - core index']
  #allocation1 [shape = 'u32[144,128]{1,0:T(1,128)}', space=vmem, size = 0x12000, scoped, tag = 'internal scratch']
  %s0 = inlined_call_operand.vmem [shape: bf16[16,256], index: 0, kind: input, shape index: {}]
  %s1 = inlined_call_operand.hbm [shape: bf16[256,512], index: 1, kind: input, shape index: {}]
  %s2 = inlined_call_operand.hbm [shape: f32[16,512], index: 2, kind: output, shape index: {}]
  %s3 = sld [smem:[#allocation0]]
  $region45: #{_vhead_forward.1} parent=0
    _
  %s5 = ssub.s32 1, %s3
  %s6 = scalar_select 0, %s5, %s3
  $region1: #{_vhead_forward.1} parent=0
    #allocation2 [shape = 'u8[262144]{0}', space=vmem, size = 0x40000, scoped, tag = 'input window, operand 1']
    #allocation3 [shape = 's32[2]{0}', space=sflag, size = 0x8, scoped, tag = 'scoped memory for _vhead_forward.1']
    #allocation4 [shape = 's32[2]{0}', space=sflag, size = 0x8, scoped, tag = 'scoped memory for _vhead_forward.1']
    #allocation5 [shape = 'u8[32768]{0}', space=vmem, size = 0x8000, scoped, tag = 'output window, operand 0']
    %7 = vsyncpa [#allocation3], 0
    %s8 = scalar_lea.sflag [#allocation3], 1
    %9 = vsyncpa %s8, 0
    %10 = vsyncpa [#allocation4], 0
    %s11 = scalar_lea.sflag [#allocation4], 1
    %12 = vsyncpa %s11, 0
    loop: start=0, step=1, limit=4
    $region2: #{_vhead_forward.1} parent=1 // loop_pre_header
      _
    $region3: #{_vhead_forward.1} parent=1 // loop_header
      %s14 = sphi 0, %s18
      %p15 = scmp.ge.s32.totalorder %s14, 4
      %s21 = sphi 0, %s33
      %s22 = sphi 0, %s29
      %s23 = sphi 0, %s21
      %s24 = sphi 0, %s22
      %s25 = sphi 0, %s23
      %s26 = sphi 0, %s24
      %s36 = sphi 0, %s38
      %s39 = sphi 0, %s36
      %s40 = sphi 0, %s39
      %s56 = sphi 0, %s40
      %s62 = sphi 0, %s64
      %s65 = sphi 0, %s62
      %s66 = sphi 0, %s65
      %s82 = sphi 0, %s66
      %s90 = sphi 0, %s92
      %s93 = sphi 0, %s90
      %s94 = sphi 0, %s93
      %s110 = sphi 0, %s94
    $region4: #{_vhead_forward.1} parent=1 // loop_header_branch
      %17 = sbr.rel (%p15) target = $region8
    $region5: #{_vhead_forward.1} parent=1 // loop_body
      %s19 = ssub.s32 %s14, 1
      %s20 = ssub.s32 %s14, 2
      %s27 = sadd.s32 1, %s22
      %p28 = scmp.ge.s32.totalorder %s27, 1
      %s29 = scalar_select %p28, 0, %s27
      %s30 = sadd.s32 1, %s21
      %s31 = scalar_select %p28, %s30, %s21
      %p32 = scmp.ge.s32.totalorder %s31, 2
      %s33 = scalar_select %p32, 0, %s31
      %s34 = ssub.s32 %s22, %s29
      %p35 = scmp.eq.s32.totalorder %s34, 0
      %s37 = sadd.s32 %s36, 1
      %s38 = scalar_select %p35, %s36, %s37
      %p41 = pneg %p35
      %p42 = scmp.eq.s32.totalorder %s14, 1
      %p43 = por %p41, %p42
      %p44 = scmp.ne.s32.totalorder %s36, %s39
      %p45 = scmp.eq.s32.totalorder %s14, 0
      %p46 = por %p44, %p45
      %p47 = scmp.ne.s32.totalorder %s36, %s39
      %p48 = scmp.eq.s32.totalorder %s19, 1
      %p49 = por %p47, %p48
      %p50 = scmp.ne.s32.totalorder %s39, %s40
      %p51 = scmp.eq.s32.totalorder %s19, 0
      %p52 = por %p50, %p51
      %p53 = scmp.ne.s32.totalorder %s39, %s40
      %p54 = scmp.eq.s32.totalorder %s20, 1
      %p55 = por %p53, %p54
      %p57 = scmp.ne.s32.totalorder %s40, %s56
      %p58 = scmp.eq.s32.totalorder %s20, 0
      %p59 = por %p57, %p58
      %s60 = ssub.s32 %s21, %s33
      %p61 = scmp.eq.s32.totalorder %s60, 0
      %s63 = sadd.s32 %s62, 1
      %s64 = scalar_select %p61, %s62, %s63
      %p67 = pneg %p61
      %p68 = scmp.eq.s32.totalorder %s14, 1
      %p69 = por %p67, %p68
      %p70 = scmp.ne.s32.totalorder %s62, %s65
      %p71 = scmp.eq.s32.totalorder %s14, 0
      %p72 = por %p70, %p71
      %p73 = scmp.ne.s32.totalorder %s62, %s65
      %p74 = scmp.eq.s32.totalorder %s19, 1
      %p75 = por %p73, %p74
      %p76 = scmp.ne.s32.totalorder %s65, %s66
      %p77 = scmp.eq.s32.totalorder %s19, 0
      %p78 = por %p76, %p77
      %p79 = scmp.ne.s32.totalorder %s65, %s66
      %p80 = scmp.eq.s32.totalorder %s20, 1
      %p81 = por %p79, %p80
      %p83 = scmp.ne.s32.totalorder %s66, %s82
      %p84 = scmp.eq.s32.totalorder %s20, 0
      %p85 = por %p83, %p84
      %s86 = ssub.s32 %s22, %s29
      %s87 = ssub.s32 %s21, %s33
      %s88 = sor.u32 %s86, %s87
      %p89 = scmp.eq.s32.totalorder %s88, 0
      %s91 = sadd.s32 %s90, 1
      %s92 = scalar_select %p89, %s90, %s91
      %p95 = pneg %p89
      %p96 = scmp.eq.s32.totalorder %s14, 1
      %p97 = por %p95, %p96
      %p98 = scmp.ne.s32.totalorder %s90, %s93
      %p99 = scmp.eq.s32.totalorder %s14, 0
      %p100 = por %p98, %p99
      %p101 = scmp.ne.s32.totalorder %s90, %s93
      %p102 = scmp.eq.s32.totalorder %s19, 1
      %p103 = por %p101, %p102
      %p104 = scmp.ne.s32.totalorder %s93, %s94
      %p105 = scmp.eq.s32.totalorder %s19, 0
      %p106 = por %p104, %p105
      %p107 = scmp.ne.s32.totalorder %s93, %s94
      %p108 = scmp.eq.s32.totalorder %s20, 1
      %p109 = por %p107, %p108
      %p111 = scmp.ne.s32.totalorder %s94, %s110
      %p112 = scmp.eq.s32.totalorder %s20, 0
      %p113 = por %p111, %p112
      %p114 = scmp.le.s32.totalorder 1, %s14
      %p115 = scmp.lt.s32.totalorder %s14, 3
      %p116 = pnand %p114, %p115
      %p117 = pneg %p116
      // Predicated region
      $region9: #{_vhead_forward.1} parent=5 // pred_check
        _
      $region10: #{_vhead_forward.1} parent=5 // pred_check_branch
        %119 = sbr.rel (%p116) target = $region12
      $region11: #{_vhead_forward.1} parent=5 // pred_region
        %s120 = ssub.s32 %s14, 1
        // Predicated region
        $region13: #{_vhead_forward.1} parent=11 // pred_check
          %p121 = pneg %p52
        $region14: #{_vhead_forward.1} parent=11 // pred_check_branch
          %123 = sbr.rel (%p121) target = $region16
        $region15: #{_vhead_forward.1} parent=11 // pred_region
          %s124 = smul.u32 2, %s24
          %p125 = scmp.lt.s32.totalorder %s124, 1
          %s126 = scalar_select %p125, %s124, 1
          %s127 = smul.addr %s126, 2
          %s128 = smul.addr %s127, 4
          %s129 = scalar_lea.vmem %s0, %s128
          %s130 = smul.u32 2, %s24
        $region16: #{_vhead_forward.1} parent=11 // pred_fallthru
          _
      $region12: #{_vhead_forward.1} parent=5 // pred_fallthru
        _
      %p131 = scmp.lt.s32.totalorder %s14, 2
      // Predicated region
      $region17: #{_vhead_forward.1} parent=5 // pred_check
        %p132 = pneg %p131
      $region18: #{_vhead_forward.1} parent=5 // pred_check_branch
        %134 = sbr.rel (%p132) target = $region20
      $region19: #{_vhead_forward.1} parent=5 // pred_region
        // Predicated region
        $region21: #{_vhead_forward.1} parent=19 // pred_check
          %p135 = pneg %p72
        $region22: #{_vhead_forward.1} parent=19 // pred_check_branch
          %137 = sbr.rel (%p135) target = $region24
        $region23: #{_vhead_forward.1} parent=19 // pred_region
          %s138 = sand.u32 %s62, 1
          %s139 = scalar_lea.sflag [#allocation3], %s138
          %s140 = sand.u32 %s62, 1
          %s141 = smul.addr %s140, 256
          %s142 = scalar_lea.vmem [#allocation2], %s141
          %s143 = smul.u32 2, %s21
          %s145 = ssub.s32 4096, 4096
          %146 = vsyncadd %s139, %s145
          %s147 = smul.addr %s143, 64
          %s148 = scalar_lea.hbm %s1, %s147
          %s149 = sshll.u32 %s142, 4
          %s150 = int_to_ptr.vmem [resolvable:$true] %s149
          %155 = dma.hbm_to_vmem [thread:$0]  %s148, 4096, %s150, %s139, 256, 128, 8
        $region24: #{_vhead_forward.1} parent=19 // pred_fallthru
          _
      $region20: #{_vhead_forward.1} parent=5 // pred_fallthru
        _
      %p156 = scmp.le.s32.totalorder 1, %s14
      %p157 = scmp.lt.s32.totalorder %s14, 3
      %p158 = pnand %p156, %p157
      %p159 = pneg %p158
      // Predicated region
      $region25: #{_vhead_forward.1} parent=5 // pred_check
        _
      $region26: #{_vhead_forward.1} parent=5 // pred_check_branch
        %161 = sbr.rel (%p158) target = $region28
      $region27: #{_vhead_forward.1} parent=5 // pred_region
        %s162 = ssub.s32 %s14, 1
        %s163 = sand.u32 %s65, 1
        %s164 = scalar_lea.sflag [#allocation3], %s163
        %s165 = sand.u32 %s65, 1
        %s166 = smul.addr %s165, 256
        %s167 = scalar_lea.vmem [#allocation2], %s166
        // Predicated region
        $region29: #{_vhead_forward.1} parent=27 // pred_check
          %p168 = pneg %p78
        $region30: #{_vhead_forward.1} parent=27 // pred_check_branch
          %170 = sbr.rel (%p168) target = $region32
        $region31: #{_vhead_forward.1} parent=27 // pred_region
          %171 = dma.done %s164, 4096
        $region32: #{_vhead_forward.1} parent=27 // pred_fallthru
          _
        %s172 = smul.u32 2, %s24
        %p173 = scmp.lt.s32.totalorder %s172, 1
        %s174 = scalar_select %p173, %s172, 1
        %s175 = smul.addr %s174, 2
        %s176 = smul.addr %s175, 4
        %s177 = scalar_lea.vmem %s0, %s176
        %p178 = pneg %p52
        %p179 = pneg %p49
        %s180 = sand.u32 %s65, 1
        %s181 = scalar_lea.sflag [#allocation3], %s180
        %s182 = sand.u32 %s65, 1
        %s183 = smul.addr %s182, 256
        %s184 = scalar_lea.vmem [#allocation2], %s183
        %p185 = pneg %p78
        %p186 = pneg %p75
        %p187 = pneg %p106
        %p188 = pneg %p103
        %s189 = sand.u32 %s93, 1
        %s190 = scalar_lea.sflag [#allocation4], %s189
        %s191 = sand.u32 %s93, 1
        %s192 = smul.addr %s191, 32
        %s193 = scalar_lea.vmem [#allocation5], %s192
        %s194 = smul.u32 2, %s24
        %p195 = scmp.lt.s32.totalorder %s194, 1
        %s196 = scalar_select %p195, %s194, 1
        %s197 = smul.addr %s196, 2
        %s198 = smul.addr %s197, 4
        %s199 = scalar_lea.vmem %s0, %s198
        %s200 = smul.u32 2, %s24
        %s201 = smul.u32 2, %s23
        %s202 = smul.u32 2, %s24
        %s203 = smul.u32 2, %s23
        %v204 = vld [vmem:[%s199] sm:$0xff]
        %v205 = vld [vmem:[%s199 + $0x8] sm:$0xff]
        %v206 = vld [vmem:[%s167] sm:$0xff]
        %v207 = vld [vmem:[%s167 + $0x8] sm:$0xff]
        %v208 = vld [vmem:[%s167 + $0x10] sm:$0xff]
        %v209 = vld [vmem:[%s167 + $0x18] sm:$0xff]
        %v210 = vld [vmem:[%s167 + $0x20] sm:$0xff]
        %v211 = vld [vmem:[%s167 + $0x28] sm:$0xff]
        %v212 = vld [vmem:[%s167 + $0x30] sm:$0xff]
        %v213 = vld [vmem:[%s167 + $0x38] sm:$0xff]
        %v214 = vld [vmem:[%s167 + $0x40] sm:$0xff]
        %v215 = vld [vmem:[%s167 + $0x48] sm:$0xff]
        %v216 = vld [vmem:[%s167 + $0x50] sm:$0xff]
        %v217 = vld [vmem:[%s167 + $0x58] sm:$0xff]
        %v218 = vld [vmem:[%s167 + $0x60] sm:$0xff]
        %v219 = vld [vmem:[%s167 + $0x68] sm:$0xff]
        %v220 = vld [vmem:[%s167 + $0x70] sm:$0xff]
        %v221 = vld [vmem:[%s167 + $0x78] sm:$0xff]
        %v222 = vld [vmem:[%s167 + $0x80] sm:$0xff]
        %v223 = vld [vmem:[%s167 + $0x88] sm:$0xff]
        %v224 = vld [vmem:[%s167 + $0x90] sm:$0xff]
        %v225 = vld [vmem:[%s167 + $0x98] sm:$0xff]
        %v226 = vld [vmem:[%s167 + $0xa0] sm:$0xff]
        %v227 = vld [vmem:[%s167 + $0xa8] sm:$0xff]
        %v228 = vld [vmem:[%s167 + $0xb0] sm:$0xff]
        %v229 = vld [vmem:[%s167 + $0xb8] sm:$0xff]
        %v230 = vld [vmem:[%s167 + $0xc0] sm:$0xff]
        %v231 = vld [vmem:[%s167 + $0xc8] sm:$0xff]
        %v232 = vld [vmem:[%s167 + $0xd0] sm:$0xff]
        %v233 = vld [vmem:[%s167 + $0xd8] sm:$0xff]
        %v234 = vld [vmem:[%s167 + $0xe0] sm:$0xff]
        %v235 = vld [vmem:[%s167 + $0xe8] sm:$0xff]
        %v236 = vld [vmem:[%s167 + $0xf0] sm:$0xff]
        %v237 = vld [vmem:[%s167 + $0xf8] sm:$0xff]
        %v240 = vunpack.c.l.b16 %v204
        %v241 = vunpack.c.h.b16 %v204
        %v242 = vunpack.c.l.b16 %v205
        %v243 = vunpack.c.h.b16 %v205
        %v244 = vpack.c.b16 %v242, %v240
        %v245 = vpack.c.b16 %v243, %v241
        %v280 = vunpack.c.l.b16 %v206
        %v281 = vunpack.c.h.b16 %v206
        %v282 = vunpack.c.l.b16 %v207
        %v283 = vunpack.c.h.b16 %v207
        %v284 = vunpack.c.l.b16 %v208
        %v285 = vunpack.c.h.b16 %v208
        %v286 = vunpack.c.l.b16 %v209
        %v287 = vunpack.c.h.b16 %v209
        %v288 = vunpack.c.l.b16 %v210
        %v289 = vunpack.c.h.b16 %v210
        %v290 = vunpack.c.l.b16 %v211
        %v291 = vunpack.c.h.b16 %v211
        %v292 = vunpack.c.l.b16 %v212
        %v293 = vunpack.c.h.b16 %v212
        %v294 = vunpack.c.l.b16 %v213
        %v295 = vunpack.c.h.b16 %v213
        %v296 = vunpack.c.l.b16 %v214
        %v297 = vunpack.c.h.b16 %v214
        %v298 = vunpack.c.l.b16 %v215
        %v299 = vunpack.c.h.b16 %v215
        %v300 = vunpack.c.l.b16 %v216
        %v301 = vunpack.c.h.b16 %v216
        %v302 = vunpack.c.l.b16 %v217
        %v303 = vunpack.c.h.b16 %v217
        %v304 = vunpack.c.l.b16 %v218
        %v305 = vunpack.c.h.b16 %v218
        %v306 = vunpack.c.l.b16 %v219
        %v307 = vunpack.c.h.b16 %v219
        %v308 = vunpack.c.l.b16 %v220
        %v309 = vunpack.c.h.b16 %v220
        %v310 = vunpack.c.l.b16 %v221
        %v311 = vunpack.c.h.b16 %v221
        %v312 = vunpack.c.l.b16 %v222
        %v313 = vunpack.c.h.b16 %v222
        %v314 = vunpack.c.l.b16 %v223
        %v315 = vunpack.c.h.b16 %v223
        %v316 = vunpack.c.l.b16 %v224
        %v317 = vunpack.c.h.b16 %v224
        %v318 = vunpack.c.l.b16 %v225
        %v319 = vunpack.c.h.b16 %v225
        %v320 = vunpack.c.l.b16 %v226
        %v321 = vunpack.c.h.b16 %v226
        %v322 = vunpack.c.l.b16 %v227
        %v323 = vunpack.c.h.b16 %v227
        %v324 = vunpack.c.l.b16 %v228
        %v325 = vunpack.c.h.b16 %v228
        %v326 = vunpack.c.l.b16 %v229
        %v327 = vunpack.c.h.b16 %v229
        %v328 = vunpack.c.l.b16 %v230
        %v329 = vunpack.c.h.b16 %v230
        %v330 = vunpack.c.l.b16 %v231
        %v331 = vunpack.c.h.b16 %v231
        %v332 = vunpack.c.l.b16 %v232
        %v333 = vunpack.c.h.b16 %v232
        %v334 = vunpack.c.l.b16 %v233
        %v335 = vunpack.c.h.b16 %v233
        %v336 = vunpack.c.l.b16 %v234
        %v337 = vunpack.c.h.b16 %v234
        %v338 = vunpack.c.l.b16 %v235
        %v339 = vunpack.c.h.b16 %v235
        %v340 = vunpack.c.l.b16 %v236
        %v341 = vunpack.c.h.b16 %v236
        %v342 = vunpack.c.l.b16 %v237
        %v343 = vunpack.c.h.b16 %v237
        %v344 = vpack.c.b16 %v282, %v280
        %v345 = vpack.c.b16 %v283, %v281
        %v346 = vpack.c.b16 %v286, %v284
        %v347 = vpack.c.b16 %v287, %v285
        %v348 = vpack.c.b16 %v290, %v288
        %v349 = vpack.c.b16 %v291, %v289
        %v350 = vpack.c.b16 %v294, %v292
        %v351 = vpack.c.b16 %v295, %v293
        %v352 = vpack.c.b16 %v298, %v296
        %v353 = vpack.c.b16 %v299, %v297
        %v354 = vpack.c.b16 %v302, %v300
        %v355 = vpack.c.b16 %v303, %v301
        %v356 = vpack.c.b16 %v306, %v304
        %v357 = vpack.c.b16 %v307, %v305
        %v358 = vpack.c.b16 %v310, %v308
        %v359 = vpack.c.b16 %v311, %v309
        %v360 = vpack.c.b16 %v314, %v312
        %v361 = vpack.c.b16 %v315, %v313
        %v362 = vpack.c.b16 %v318, %v316
        %v363 = vpack.c.b16 %v319, %v317
        %v364 = vpack.c.b16 %v322, %v320
        %v365 = vpack.c.b16 %v323, %v321
        %v366 = vpack.c.b16 %v326, %v324
        %v367 = vpack.c.b16 %v327, %v325
        %v368 = vpack.c.b16 %v330, %v328
        %v369 = vpack.c.b16 %v331, %v329
        %v370 = vpack.c.b16 %v334, %v332
        %v371 = vpack.c.b16 %v335, %v333
        %v372 = vpack.c.b16 %v338, %v336
        %v373 = vpack.c.b16 %v339, %v337
        %v374 = vpack.c.b16 %v342, %v340
        %v375 = vpack.c.b16 %v343, %v341
        %408 = vmatprep.subr.bf16.mxu0 %v359
        %409 = vmatpush1.bf16.msra.mxu0 %v358
        %410 = vmatprep.subr.bf16.mxu0 %v357
        %411 = vmatpush1.bf16.msra.mxu0 %v356
        %412 = vmatprep.subr.bf16.mxu0 %v355
        %413 = vmatpush1.bf16.msra.mxu0 %v354
        %414 = vmatprep.subr.bf16.mxu0 %v353
        %415 = vmatpush1.bf16.msra.mxu0 %v352
        %416 = vmatprep.subr.bf16.mxu0 %v351
        %417 = vmatpush1.bf16.msra.mxu0 %v350
        %418 = vmatprep.subr.bf16.mxu0 %v349
        %419 = vmatpush1.bf16.msra.mxu0 %v348
        %420 = vmatprep.subr.bf16.mxu0 %v347
        %421 = vmatpush1.bf16.msra.mxu0 %v346
        %422 = vmatprep.subr.bf16.mxu0 %v345
        %423 = vmatpush1.bf16.msra.mxu0 %v344
        %424 = vmatprep.subr.bf16.mxu0 %v375
        %425 = vmatpush2.bf16.msra.mxu0 %v374
        %426 = vmatprep.subr.bf16.mxu0 %v373
        %427 = vmatpush2.bf16.msra.mxu0 %v372
        %428 = vmatprep.subr.bf16.mxu0 %v371
        %429 = vmatpush2.bf16.msra.mxu0 %v370
        %430 = vmatprep.subr.bf16.mxu0 %v369
        %431 = vmatpush2.bf16.msra.mxu0 %v368
        %432 = vmatprep.subr.bf16.mxu0 %v367
        %433 = vmatpush2.bf16.msra.mxu0 %v366
        %434 = vmatprep.subr.bf16.mxu0 %v365
        %435 = vmatpush2.bf16.msra.mxu0 %v364
        %436 = vmatprep.subr.bf16.mxu0 %v363
        %437 = vmatpush2.bf16.msra.mxu0 %v362
        %438 = vmatprep.subr.bf16.mxu0 %v361
        %439 = vmatpush2.bf16.msra.mxu0 %v360
        %440 = vmatprep.mubr.bf16.mxu0 %v245
        %441 = vmatmul.mubr.bf16.gmra.mxu0 %v244
        %v442 = vpop.f32.mrf.mxu0
        %v443 = vadd.f32 0.0, %v442
        %v444 = vpop.f32.mrf.mxu0
        %v445 = vadd.f32 0.0, %v444
        %v446 = vpop.f32.mrf.mxu0
        %v447 = vadd.f32 0.0, %v446
        %v448 = vpop.f32.mrf.mxu0
        %v449 = vadd.f32 0.0, %v448
        %450 = vdwg.mxu0
        %451 = vst [vmem:[%s193] sm:$0xff] %v443
        %452 = vst [vmem:[%s193 + $0x8] sm:$0xff] %v445
        %453 = vst [vmem:[%s193 + $0x10] sm:$0xff] %v447
        %454 = vst [vmem:[%s193 + $0x18] sm:$0xff] %v449
        %s455 = sand.u32 %s93, 1
        %s456 = scalar_lea.sflag [#allocation4], %s455
        %s457 = sand.u32 %s93, 1
        %s458 = smul.addr %s457, 32
        %s459 = scalar_lea.vmem [#allocation5], %s458
        // Predicated region
        $region33: #{_vhead_forward.1} parent=27 // pred_check
          %p460 = pneg %p103
        $region34: #{_vhead_forward.1} parent=27 // pred_check_branch
          %462 = sbr.rel (%p460) target = $region36
        $region35: #{_vhead_forward.1} parent=27 // pred_region
          %s463 = smul.u32 2, %s24
          %s464 = smul.u32 2, %s23
          %s466 = ssub.s32 512, 512
          %467 = vsyncadd %s456, %s466
          %s468 = smul.addr %s463, 4
          %s469 = sadd.s32 %s464, %s468
          %s470 = smul.addr %s469, 128
          %s471 = scalar_lea.hbm %s2, %s470
          %s472 = sshll.u32 %s459, 4
          %s473 = int_to_ptr.vmem [resolvable:$true] %s472
          %478 = dma.vmem_to_hbm [thread:$0]  %s473, 512, %s471, %s456, 256, 512, 16
        $region36: #{_vhead_forward.1} parent=27 // pred_fallthru
          _
      $region28: #{_vhead_forward.1} parent=5 // pred_fallthru
        _
      %p479 = scmp.le.s32.totalorder 2, %s14
      // Predicated region
      $region37: #{_vhead_forward.1} parent=5 // pred_check
        %p480 = pneg %p479
      $region38: #{_vhead_forward.1} parent=5 // pred_check_branch
        %482 = sbr.rel (%p480) target = $region40
      $region39: #{_vhead_forward.1} parent=5 // pred_region
        %s483 = ssub.s32 %s14, 2
        // Predicated region
        $region41: #{_vhead_forward.1} parent=39 // pred_check
          %p484 = pneg %p109
        $region42: #{_vhead_forward.1} parent=39 // pred_check_branch
          %486 = sbr.rel (%p484) target = $region44
        $region43: #{_vhead_forward.1} parent=39 // pred_region
          %s487 = sand.u32 %s94, 1
          %s488 = scalar_lea.sflag [#allocation4], %s487
          %s489 = sand.u32 %s94, 1
          %s490 = smul.addr %s489, 32
          %s491 = scalar_lea.vmem [#allocation5], %s490
          %492 = dma.done %s488, 512
        $region44: #{_vhead_forward.1} parent=39 // pred_fallthru
          _
      $region40: #{_vhead_forward.1} parent=5 // pred_fallthru
        _
    $region6: #{_vhead_forward.1} parent=1 // loop_footer
      %s18 = sadd.s32 1, %s14
    $region7: #{_vhead_forward.1} parent=1 // loop_footer_branch
      %13 = sbr.rel target = $region3
    $region8: #{_vhead_forward.1} parent=1 // loop_exit
      _
    %493 = vsyncpa [#allocation3], 1
    %s494 = scalar_lea.sflag [#allocation3], 1
    %495 = vsyncpa %s494, 1
    %496 = vsyncpa [#allocation4], 1
    %s497 = scalar_lea.sflag [#allocation4], 1
    %498 = vsyncpa %s497, 1

</llo_original>
